<compile_context>
chip_gen: v6e
topology: v6e:2x2x1
jax: 0.10.0
libtpu: 0.0.40
codegen_flags: <defaults>
</compile_context>

<pallas_src>
import functools

import jax
import jax.numpy as jnp
from jax.experimental import pallas as pl
from jax.experimental.pallas import tpu as pltpu


def _ffn_kernel(x_ref, w1_ref, b1_ref, w2_ref, b2_ref, o_ref, acc_ref):
    """One (token-tile, hidden-tile) step of  relu(X @ W1 + b1) @ W2 + b2."""
    h = pl.program_id(1)

    @pl.when(h == 0)
    def _init():
        acc_ref[...] = jnp.zeros_like(acc_ref)

    x = x_ref[...].astype(jnp.float32)
    pre = jnp.dot(x, w1_ref[...].astype(jnp.float32),
                  preferred_element_type=jnp.float32)
    act = jnp.maximum(pre + b1_ref[...].astype(jnp.float32), 0.0)   # ReLU
    acc_ref[...] += jnp.dot(act, w2_ref[...].astype(jnp.float32),
                            preferred_element_type=jnp.float32)

    @pl.when(h == pl.num_programs(1) - 1)
    def _finalize():
        o_ref[...] = (acc_ref[...] + b2_ref[...].astype(jnp.float32)).astype(o_ref.dtype)


def _pick_tile(full, pref, align):
    """Largest tile <= pref that divides `full` and is a multiple of `align`,
    falling back to the full extent (always legal as a block dim)."""
    if full <= pref:
        return full
    t = (pref // align) * align
    while t >= align:
        if full % t == 0:
            return t
        t -= align
    return full


@functools.partial(jax.jit, static_argnames=("tm", "th"))
def position_wise_ffn(x, w1, b1, w2, b2, *, tm=256, th=512):
    """Fused FFN. x: (..., d_in); w1: (d_hidden, d_in); w2: (d_out, d_hidden)."""
    orig_shape = x.shape
    d_in = orig_shape[-1]
    n = 1
    for s in orig_shape[:-1]:
        n *= s
    x2 = x.reshape(n, d_in)

    d_hidden = w1.shape[0]
    d_out = w2.shape[0]
    w1t = w1.T                        # (d_in, d_hidden)  — column (hidden) tiles stream
    w2t = w2.T                        # (d_hidden, d_out) — row (hidden) tiles stream
    b1r = b1.reshape(1, d_hidden)
    b2r = b2.reshape(1, d_out)

    tm = _pick_tile(n, tm, 8)          # token-tile: sublane-aligned
    th = _pick_tile(d_hidden, th, 128)  # hidden-tile: lane-aligned

    grid = (n // tm, d_hidden // th)

    out = pl.pallas_call(
        _ffn_kernel,
        out_shape=jax.ShapeDtypeStruct((n, d_out), x.dtype),
        grid_spec=pltpu.PrefetchScalarGridSpec(
            num_scalar_prefetch=0,
            grid=grid,
            in_specs=[
                # X tile: resident across the hidden reduction (constant in h)
                pl.BlockSpec((tm, d_in), lambda i, h: (i, 0)),
                # W1 hidden-column tile
                pl.BlockSpec((d_in, th), lambda i, h: (0, h)),
                # b1 hidden tile
                pl.BlockSpec((1, th), lambda i, h: (0, h)),
                # W2 hidden-row tile
                pl.BlockSpec((th, d_out), lambda i, h: (h, 0)),
                # b2: fully resident
                pl.BlockSpec((1, d_out), lambda i, h: (0, 0)),
            ],
            out_specs=pl.BlockSpec((tm, d_out), lambda i, h: (i, 0)),
            scratch_shapes=[pltpu.VMEM((tm, d_out), jnp.float32)],
        ),
        compiler_params=pltpu.CompilerParams(
            dimension_semantics=("parallel", "arbitrary")),
    )(x2, w1t, b1r, w2t, b2r)

    return out.reshape(*orig_shape[:-1], d_out)


def _reference(x, w1, b1, w2, b2):
    h = jnp.maximum(x @ w1.T + b1, 0.0)
    return h @ w2.T + b2


if __name__ == "__main__":
    key = jax.random.PRNGKey(0)
    k_x, k_w1, k_b1, k_w2, k_b2 = jax.random.split(key, 5)

    # Small shapes consistent with the module: batch=2, seq=8,
    # ffn_num_input=64, ffn_num_hiddens=256, ffn_num_outputs=64.
    B, S = 2, 8
    D_IN, D_HID, D_OUT = 64, 256, 64

    x = jax.random.normal(k_x, (B, S, D_IN), jnp.float32)
    w1 = jax.random.normal(k_w1, (D_HID, D_IN), jnp.float32) * (1.0 / D_IN ** 0.5)
    b1 = jax.random.normal(k_b1, (D_HID,), jnp.float32) * 0.02
    w2 = jax.random.normal(k_w2, (D_OUT, D_HID), jnp.float32) * (1.0 / D_HID ** 0.5)
    b2 = jax.random.normal(k_b2, (D_OUT,), jnp.float32) * 0.02

    # th=128 -> two hidden tiles, exercising the accumulator init/finalize path.
    out = position_wise_ffn(x, w1, b1, w2, b2, tm=256, th=128)
    out = jax.block_until_ready(out)

    ref = _reference(x, w1, b1, w2, b2)
    assert out.shape == (B, S, D_OUT)
    assert jnp.allclose(out, ref, atol=1e-4, rtol=1e-4), "mismatch vs reference"

    print("KERNEL_OK")
</pallas_src>

<mosaic_0001>
module attributes {stable_mosaic.version = 11 : i64} {
  func.func @_ffn_kernel(%arg0: i32, %arg1: i32, %arg2: memref<16x64xf32, #tpu.memory_space<vmem>>, %arg3: memref<64x128xf32, #tpu.memory_space<vmem>>, %arg4: memref<1x128xf32, #tpu.memory_space<vmem>>, %arg5: memref<128x64xf32, #tpu.memory_space<vmem>>, %arg6: memref<1x64xf32, #tpu.memory_space<vmem>>, %arg7: memref<16x64xf32, #tpu.memory_space<vmem>>, %arg8: memref<16x64xf32, #tpu.memory_space<vmem>>) attributes {dimension_semantics = [#tpu.dimension_semantics<parallel>, #tpu.dimension_semantics<arbitrary>], iteration_bounds = array<i64: 1, 2>, scalar_prefetch = 0 : i64, scratch_operands = 1 : i64, tpu.core_type = #tpu.core_type<tc>, window_params = [{transform_indices = @transform_0, window_bounds = array<i64: 16, 64>}, {transform_indices = @transform_1, window_bounds = array<i64: 64, 128>}, {transform_indices = @transform_2, window_bounds = array<i64: 1, 128>}, {transform_indices = @transform_3, window_bounds = array<i64: 128, 64>}, {pipeline_mode = #tpu.pipeline_mode<synchronous>, transform_indices = @transform_4, window_bounds = array<i64: 1, 64>}, {transform_indices = @transform_5, window_bounds = array<i64: 16, 64>}]} {
    %c0_i32 = arith.constant 0 : i32
    %0 = arith.cmpi eq, %arg1, %c0_i32 : i32
    %1 = arith.extui %0 : i1 to i32
    %c0_i32_0 = arith.constant 0 : i32
    %2 = arith.cmpi ne, %1, %c0_i32_0 : i32
    scf.if %2 {
      %cst_15 = arith.constant 0.000000e+00 : f32
      %19 = vector.broadcast %cst_15 : f32 to vector<16x64xf32>
      %c0_16 = arith.constant 0 : index
      %c0_17 = arith.constant 0 : index
      %20 = vector.load %arg8[%c0_16, %c0_17] : memref<16x64xf32, #tpu.memory_space<vmem>>, vector<16x64xf32>
      tpu.vector_store %arg8[%c0_16, %c0_17], %19 {strides = array<i32>} : memref<16x64xf32, #tpu.memory_space<vmem>>, vector<16x64xf32>,
    } else {
    }
    %c0 = arith.constant 0 : index
    %c0_1 = arith.constant 0 : index
    %3 = vector.load %arg2[%c0, %c0_1] : memref<16x64xf32, #tpu.memory_space<vmem>>, vector<16x64xf32>
    %c0_2 = arith.constant 0 : index
    %c0_3 = arith.constant 0 : index
    %4 = vector.load %arg3[%c0_2, %c0_3] : memref<64x128xf32, #tpu.memory_space<vmem>>, vector<64x128xf32>
    %cst = arith.constant dense<0.000000e+00> : vector<16x128xf32>
    %5 = tpu.matmul %3, %4, %cst {dimension_numbers = #tpu.dot_dimension_numbers<[1], [0], [0], [1], [0, 0, 1, 1], [], []>} : vector<16x64xf32>, vector<64x128xf32>, vector<16x128xf32> -> vector<16x128xf32>
    %c0_4 = arith.constant 0 : index
    %c0_5 = arith.constant 0 : index
    %6 = vector.load %arg4[%c0_4, %c0_5] : memref<1x128xf32, #tpu.memory_space<vmem>>, vector<1x128xf32>
    %7 = vector.broadcast %6 : vector<1x128xf32> to vector<16x128xf32>
    %8 = arith.addf %5, %7 : vector<16x128xf32>
    %cst_6 = arith.constant 0.000000e+00 : f32
    %9 = vector.broadcast %cst_6 : f32 to vector<16x128xf32>
    %10 = arith.maximumf %8, %9 : vector<16x128xf32>
    %c0_7 = arith.constant 0 : index
    %c0_8 = arith.constant 0 : index
    %11 = vector.load %arg8[%c0_7, %c0_8] : memref<16x64xf32, #tpu.memory_space<vmem>>, vector<16x64xf32>
    %c0_9 = arith.constant 0 : index
    %c0_10 = arith.constant 0 : index
    %12 = vector.load %arg5[%c0_9, %c0_10] : memref<128x64xf32, #tpu.memory_space<vmem>>, vector<128x64xf32>
    %cst_11 = arith.constant dense<0.000000e+00> : vector<16x64xf32>
    %13 = tpu.matmul %10, %12, %cst_11 {dimension_numbers = #tpu.dot_dimension_numbers<[1], [0], [0], [1], [0, 0, 1, 1], [], []>} : vector<16x128xf32>, vector<128x64xf32>, vector<16x64xf32> -> vector<16x64xf32>
    %14 = arith.addf %11, %13 : vector<16x64xf32>
    %c0_12 = arith.constant 0 : index
    %c0_13 = arith.constant 0 : index
    %15 = vector.load %arg8[%c0_12, %c0_13] : memref<16x64xf32, #tpu.memory_space<vmem>>, vector<16x64xf32>
    tpu.vector_store %arg8[%c0_12, %c0_13], %14 {strides = array<i32>} : memref<16x64xf32, #tpu.memory_space<vmem>>, vector<16x64xf32>,
    %c1_i32 = arith.constant 1 : i32
    %16 = arith.cmpi eq, %arg1, %c1_i32 : i32
    %17 = arith.extui %16 : i1 to i32
    %c0_i32_14 = arith.constant 0 : i32
    %18 = arith.cmpi ne, %17, %c0_i32_14 : i32
    scf.if %18 {
      %c0_15 = arith.constant 0 : index
      %c0_16 = arith.constant 0 : index
      %19 = vector.load %arg8[%c0_15, %c0_16] : memref<16x64xf32, #tpu.memory_space<vmem>>, vector<16x64xf32>
      %c0_17 = arith.constant 0 : index
      %c0_18 = arith.constant 0 : index
      %20 = vector.load %arg6[%c0_17, %c0_18] : memref<1x64xf32, #tpu.memory_space<vmem>>, vector<1x64xf32>
      %21 = vector.broadcast %20 : vector<1x64xf32> to vector<16x64xf32>
      %22 = arith.addf %19, %21 : vector<16x64xf32>
      %c0_19 = arith.constant 0 : index
      %c0_20 = arith.constant 0 : index
      %23 = vector.load %arg7[%c0_19, %c0_20] : memref<16x64xf32, #tpu.memory_space<vmem>>, vector<16x64xf32>
      tpu.vector_store %arg7[%c0_19, %c0_20], %22 {strides = array<i32>} : memref<16x64xf32, #tpu.memory_space<vmem>>, vector<16x64xf32>,
    } else {
    }
    return
  }
  func.func @transform_0(%arg0: i32, %arg1: i32) -> (i32, i32) {
    %c0_i32 = arith.constant 0 : i32
    %c0_i32_0 = arith.constant 0 : i32
    return %arg0, %c0_i32 : i32, i32
  }
  func.func @transform_1(%arg0: i32, %arg1: i32) -> (i32, i32) {
    %c0_i32 = arith.constant 0 : i32
    %c0_i32_0 = arith.constant 0 : i32
    return %c0_i32, %arg1 : i32, i32
  }
  func.func @transform_2(%arg0: i32, %arg1: i32) -> (i32, i32) {
    %c0_i32 = arith.constant 0 : i32
    %c0_i32_0 = arith.constant 0 : i32
    return %c0_i32, %arg1 : i32, i32
  }
  func.func @transform_3(%arg0: i32, %arg1: i32) -> (i32, i32) {
    %c0_i32 = arith.constant 0 : i32
    %c0_i32_0 = arith.constant 0 : i32
    return %arg1, %c0_i32 : i32, i32
  }
  func.func @transform_4(%arg0: i32, %arg1: i32) -> (i32, i32) {
    %c0_i32 = arith.constant 0 : i32
    %c0_i32_0 = arith.constant 0 : i32
    %c0_i32_1 = arith.constant 0 : i32
    return %c0_i32, %c0_i32_0 : i32, i32
  }
  func.func @transform_5(%arg0: i32, %arg1: i32) -> (i32, i32) {
    %c0_i32 = arith.constant 0 : i32
    %c0_i32_0 = arith.constant 0 : i32
    return %arg0, %c0_i32 : i32, i32
  }
}

</mosaic_0001>

<llo_original>
// kernel: position_wise_ffn.1
$region0: #{position_wise_ffn.1}
  #allocation0 [shape = 'u32[]', space=smem, size = 0x4, offset = 0x4, fixed_abs, tag = 'smem constant byte address 0x4 - core index']
  #allocation1 [shape = 'u32[144,128]{1,0:T(1,128)}', space=vmem, size = 0x12000, scoped, tag = 'internal scratch']
  #allocation2 [shape = 'f32[16,64]{1,0:T(8,128)}', space=vmem, size = 0x2000, scoped, tag = 'scratch operand']
  %s0 = inlined_call_operand.vmem [shape: f32[16,64], index: 0, kind: input, shape index: {}]
  %s1 = inlined_call_operand.vmem [shape: f32[64,256], index: 1, kind: input, shape index: {}]
  %s2 = inlined_call_operand.vmem [shape: f32[1,256], index: 2, kind: input, shape index: {}]
  %s3 = inlined_call_operand.vmem [shape: f32[256,64], index: 3, kind: input, shape index: {}]
  %s4 = inlined_call_operand.vmem [shape: f32[1,64], index: 4, kind: input, shape index: {}]
  %s5 = inlined_call_operand.hbm [shape: f32[16,64], index: 5, kind: output, shape index: {}]
  %s6 = sld [smem:[#allocation0]]
  $region99: #{position_wise_ffn.1} parent=0
    _
  %s8 = ssub.s32 1, %s6
  %s9 = scalar_select 0, %s8, %s6
  $region1: #{position_wise_ffn.1} parent=0
    #allocation3 [shape = 'u8[65536]{0}', space=vmem, size = 0x10000, scoped, tag = 'input window, operand 1']
    #allocation4 [shape = 'u8[8192]{0}', space=vmem, size = 0x2000, scoped, tag = 'output window, operand 0, single buffered']
    #allocation5 [shape = 's32[2]{0}', space=sflag, size = 0x8, scoped, tag = 'scoped memory for position_wise_ffn.1']
    %10 = vsyncpa [#allocation5], 0
    loop: start=0, step=1, limit=4
    $region2: #{position_wise_ffn.1} parent=1 // loop_pre_header
      _
    $region3: #{position_wise_ffn.1} parent=1 // loop_header
      %s12 = sphi 0, %s16
      %p13 = scmp.ge.s32.totalorder %s12, 4
      %s19 = sphi 0, %s31
      %s20 = sphi 0, %s27
      %s21 = sphi 0, %s19
      %s22 = sphi 0, %s20
      %s23 = sphi 0, %s21
      %s24 = sphi 0, %s22
      %s34 = sphi 0, %s36
      %s37 = sphi 0, %s34
      %s38 = sphi 0, %s37
      %s54 = sphi 0, %s38
      %s60 = sphi 0, %s62
      %s63 = sphi 0, %s60
      %s64 = sphi 0, %s63
      %s80 = sphi 0, %s64
      %s86 = sphi 0, %s88
      %s89 = sphi 0, %s86
      %s90 = sphi 0, %s89
      %s106 = sphi 0, %s90
      %s112 = sphi 0, %s114
      %s115 = sphi 0, %s112
      %s116 = sphi 0, %s115
      %s132 = sphi 0, %s116
      %s136 = sphi 0, %s136
      %s138 = sphi 0, %s136
      %s139 = sphi 0, %s138
      %s153 = sphi 0, %s139
      %s159 = sphi 0, %s161
      %s162 = sphi 0, %s159
      %s163 = sphi 0, %s162
      %s179 = sphi 0, %s163
    $region4: #{position_wise_ffn.1} parent=1 // loop_header_branch
      %15 = sbr.rel (%p13) target = $region8
    $region5: #{position_wise_ffn.1} parent=1 // loop_body
      %s17 = ssub.s32 %s12, 1
      %s18 = ssub.s32 %s12, 2
      %s25 = sadd.s32 1, %s20
      %p26 = scmp.ge.s32.totalorder %s25, 2
      %s27 = scalar_select %p26, 0, %s25
      %s28 = sadd.s32 1, %s19
      %s29 = scalar_select %p26, %s28, %s19
      %p30 = scmp.ge.s32.totalorder %s29, 1
      %s31 = scalar_select %p30, 0, %s29
      %s32 = ssub.s32 %s19, %s31
      %p33 = scmp.eq.s32.totalorder %s32, 0
      %s35 = sadd.s32 %s34, 1
      %s36 = scalar_select %p33, %s34, %s35
      %p39 = pneg %p33
      %p40 = scmp.eq.s32.totalorder %s12, 1
      %p41 = por %p39, %p40
      %p42 = scmp.ne.s32.totalorder %s34, %s37
      %p43 = scmp.eq.s32.totalorder %s12, 0
      %p44 = por %p42, %p43
      %p45 = scmp.ne.s32.totalorder %s34, %s37
      %p46 = scmp.eq.s32.totalorder %s17, 1
      %p47 = por %p45, %p46
      %p48 = scmp.ne.s32.totalorder %s37, %s38
      %p49 = scmp.eq.s32.totalorder %s17, 0
      %p50 = por %p48, %p49
      %p51 = scmp.ne.s32.totalorder %s37, %s38
      %p52 = scmp.eq.s32.totalorder %s18, 1
      %p53 = por %p51, %p52
      %p55 = scmp.ne.s32.totalorder %s38, %s54
      %p56 = scmp.eq.s32.totalorder %s18, 0
      %p57 = por %p55, %p56
      %s58 = ssub.s32 %s20, %s27
      %p59 = scmp.eq.s32.totalorder %s58, 0
      %s61 = sadd.s32 %s60, 1
      %s62 = scalar_select %p59, %s60, %s61
      %p65 = pneg %p59
      %p66 = scmp.eq.s32.totalorder %s12, 1
      %p67 = por %p65, %p66
      %p68 = scmp.ne.s32.totalorder %s60, %s63
      %p69 = scmp.eq.s32.totalorder %s12, 0
      %p70 = por %p68, %p69
      %p71 = scmp.ne.s32.totalorder %s60, %s63
      %p72 = scmp.eq.s32.totalorder %s17, 1
      %p73 = por %p71, %p72
      %p74 = scmp.ne.s32.totalorder %s63, %s64
      %p75 = scmp.eq.s32.totalorder %s17, 0
      %p76 = por %p74, %p75
      %p77 = scmp.ne.s32.totalorder %s63, %s64
      %p78 = scmp.eq.s32.totalorder %s18, 1
      %p79 = por %p77, %p78
      %p81 = scmp.ne.s32.totalorder %s64, %s80
      %p82 = scmp.eq.s32.totalorder %s18, 0
      %p83 = por %p81, %p82
      %s84 = ssub.s32 %s20, %s27
      %p85 = scmp.eq.s32.totalorder %s84, 0
      %s87 = sadd.s32 %s86, 1
      %s88 = scalar_select %p85, %s86, %s87
      %p91 = pneg %p85
      %p92 = scmp.eq.s32.totalorder %s12, 1
      %p93 = por %p91, %p92
      %p94 = scmp.ne.s32.totalorder %s86, %s89
      %p95 = scmp.eq.s32.totalorder %s12, 0
      %p96 = por %p94, %p95
      %p97 = scmp.ne.s32.totalorder %s86, %s89
      %p98 = scmp.eq.s32.totalorder %s17, 1
      %p99 = por %p97, %p98
      %p100 = scmp.ne.s32.totalorder %s89, %s90
      %p101 = scmp.eq.s32.totalorder %s17, 0
      %p102 = por %p100, %p101
      %p103 = scmp.ne.s32.totalorder %s89, %s90
      %p104 = scmp.eq.s32.totalorder %s18, 1
      %p105 = por %p103, %p104
      %p107 = scmp.ne.s32.totalorder %s90, %s106
      %p108 = scmp.eq.s32.totalorder %s18, 0
      %p109 = por %p107, %p108
      %s110 = ssub.s32 %s20, %s27
      %p111 = scmp.eq.s32.totalorder %s110, 0
      %s113 = sadd.s32 %s112, 1
      %s114 = scalar_select %p111, %s112, %s113
      %p117 = pneg %p111
      %p118 = scmp.eq.s32.totalorder %s12, 1
      %p119 = por %p117, %p118
      %p120 = scmp.ne.s32.totalorder %s112, %s115
      %p121 = scmp.eq.s32.totalorder %s12, 0
      %p122 = por %p120, %p121
      %p123 = scmp.ne.s32.totalorder %s112, %s115
      %p124 = scmp.eq.s32.totalorder %s17, 1
      %p125 = por %p123, %p124
      %p126 = scmp.ne.s32.totalorder %s115, %s116
      %p127 = scmp.eq.s32.totalorder %s17, 0
      %p128 = por %p126, %p127
      %p129 = scmp.ne.s32.totalorder %s115, %s116
      %p130 = scmp.eq.s32.totalorder %s18, 1
      %p131 = por %p129, %p130
      %p133 = scmp.ne.s32.totalorder %s116, %s132
      %p134 = scmp.eq.s32.totalorder %s18, 0
      %p135 = por %p133, %p134
      %s137 = sadd.s32 %s136, 1
      %p140 = scmp.eq.s32.totalorder %s12, 1
      %p141 = scmp.ne.s32.totalorder %s136, %s138
      %p142 = scmp.eq.s32.totalorder %s12, 0
      %p143 = por %p141, %p142
      %p144 = scmp.ne.s32.totalorder %s136, %s138
      %p145 = scmp.eq.s32.totalorder %s17, 1
      %p146 = por %p144, %p145
      %p147 = scmp.ne.s32.totalorder %s138, %s139
      %p148 = scmp.eq.s32.totalorder %s17, 0
      %p149 = por %p147, %p148
      %p150 = scmp.ne.s32.totalorder %s138, %s139
      %p151 = scmp.eq.s32.totalorder %s18, 1
      %p152 = por %p150, %p151
      %p154 = scmp.ne.s32.totalorder %s139, %s153
      %p155 = scmp.eq.s32.totalorder %s18, 0
      %p156 = por %p154, %p155
      %s157 = ssub.s32 %s19, %s31
      %p158 = scmp.eq.s32.totalorder %s157, 0
      %s160 = sadd.s32 %s159, 1
      %s161 = scalar_select %p158, %s159, %s160
      %p164 = pneg %p158
      %p165 = scmp.eq.s32.totalorder %s12, 1
      %p166 = por %p164, %p165
      %p167 = scmp.ne.s32.totalorder %s159, %s162
      %p168 = scmp.eq.s32.totalorder %s12, 0
      %p169 = por %p167, %p168
      %p170 = scmp.ne.s32.totalorder %s159, %s162
      %p171 = scmp.eq.s32.totalorder %s17, 1
      %p172 = por %p170, %p171
      %p173 = scmp.ne.s32.totalorder %s162, %s163
      %p174 = scmp.eq.s32.totalorder %s17, 0
      %p175 = por %p173, %p174
      %p176 = scmp.ne.s32.totalorder %s162, %s163
      %p177 = scmp.eq.s32.totalorder %s18, 1
      %p178 = por %p176, %p177
      %p180 = scmp.ne.s32.totalorder %s163, %s179
      %p181 = scmp.eq.s32.totalorder %s18, 0
      %p182 = por %p180, %p181
      %p183 = scmp.le.s32.totalorder 1, %s12
      %p184 = scmp.lt.s32.totalorder %s12, 3
      %p185 = pnand %p183, %p184
      %p186 = pneg %p185
      // Predicated region
      $region9: #{position_wise_ffn.1} parent=5 // pred_check
        _
      $region10: #{position_wise_ffn.1} parent=5 // pred_check_branch
        %188 = sbr.rel (%p185) target = $region12
      $region11: #{position_wise_ffn.1} parent=5 // pred_region
        %s189 = ssub.s32 %s12, 1
        // Predicated region
        $region13: #{position_wise_ffn.1} parent=11 // pred_check
          %p190 = pneg %p50
        $region14: #{position_wise_ffn.1} parent=11 // pred_check_branch
          %192 = sbr.rel (%p190) target = $region16
        $region15: #{position_wise_ffn.1} parent=11 // pred_region
          %s193 = smul.u32 2, %s21
          %p194 = scmp.lt.s32.totalorder %s193, 1
          %s195 = scalar_select %p194, %s193, 1
          %s196 = smul.addr %s195, 8
          %s197 = scalar_lea.vmem %s0, %s196
          %s198 = smul.u32 2, %s21
        $region16: #{position_wise_ffn.1} parent=11 // pred_fallthru
          _
        // Predicated region
        $region17: #{position_wise_ffn.1} parent=11 // pred_check
          %p199 = pneg %p149
        $region18: #{position_wise_ffn.1} parent=11 // pred_check_branch
          %201 = sbr.rel (%p199) target = $region20
        $region19: #{position_wise_ffn.1} parent=11 // pred_region
          _
        $region20: #{position_wise_ffn.1} parent=11 // pred_fallthru
          _
      $region12: #{position_wise_ffn.1} parent=5 // pred_fallthru
        _
      %p202 = scmp.lt.s32.totalorder %s12, 2
      // Predicated region
      $region21: #{position_wise_ffn.1} parent=5 // pred_check
        %p203 = pneg %p202
      $region22: #{position_wise_ffn.1} parent=5 // pred_check_branch
        %205 = sbr.rel (%p203) target = $region24
      $region23: #{position_wise_ffn.1} parent=5 // pred_region
        // Predicated region
        $region25: #{position_wise_ffn.1} parent=23 // pred_check
          %p206 = pneg %p70
        $region26: #{position_wise_ffn.1} parent=23 // pred_check_branch
          %208 = sbr.rel (%p206) target = $region28
        $region27: #{position_wise_ffn.1} parent=23 // pred_region
          %s209 = sand.u32 %s60, 1
          %s210 = sand.u32 %s60, 1
          %s211 = smul.addr %s210, 64
          %s212 = scalar_lea.vmem [#allocation3], %s211
          %s213 = smul.addr %s20, 8
          %s214 = scalar_lea.vmem %s1, %s213
          // Predicated region
          $region29: #{position_wise_ffn.1} parent=27 // pred_check
            _
          $region30: #{position_wise_ffn.1} parent=27 // pred_check_branch
            %216 = sbr.rel (0) target = $region32
          $region31: #{position_wise_ffn.1} parent=27 // pred_region
            // Predicated region
            $region33: #{position_wise_ffn.1} parent=31 // pred_check
              _
            $region34: #{position_wise_ffn.1} parent=31 // pred_check_branch
              %218 = sbr.rel (0) target = $region36
            $region35: #{position_wise_ffn.1} parent=31 // pred_region
              // Predicated region
              $region48: #{position_wise_ffn.1} parent=35 // pred_check
                _
              $region49: #{position_wise_ffn.1} parent=35 // pred_check_branch
                %248 = sbr.rel (0) target = $region51
              $region50: #{position_wise_ffn.1} parent=35 // pred_region
                loop: start=0, step=1, limit=1
                $region52: #{position_wise_ffn.1} parent=50 // loop_pre_header
                  _
                $region53: #{position_wise_ffn.1} parent=50 // loop_header
                  %s250 = sphi 0, %s254
                  %p251 = scmp.ge.s32.totalorder %s250, 1
                  %s255 = sphi %s214, %s214
                  %s256 = sphi %s212, %s212
                $region54: #{position_wise_ffn.1} parent=50 // loop_header_branch
                  %253 = sbr.rel (%p251) target = $region58
                $region55: #{position_wise_ffn.1} parent=50 // loop_body
                  %v257 = vld [vmem:[%s255] sm:$0xff]
                  %258 = vst [vmem:[%s256] sm:$0xff] %v257
                  %v259 = vld [vmem:[%s255 + $0x10] sm:$0xff]
                  %260 = vst [vmem:[%s256 + $0x8] sm:$0xff] %v259
                  %v261 = vld [vmem:[%s255 + $0x20] sm:$0xff]
                  %262 = vst [vmem:[%s256 + $0x10] sm:$0xff] %v261
                  %v263 = vld [vmem:[%s255 + $0x30] sm:$0xff]
                  %264 = vst [vmem:[%s256 + $0x18] sm:$0xff] %v263
                  %v265 = vld [vmem:[%s255 + $0x40] sm:$0xff]
                  %266 = vst [vmem:[%s256 + $0x20] sm:$0xff] %v265
                  %v267 = vld [vmem:[%s255 + $0x50] sm:$0xff]
                  %268 = vst [vmem:[%s256 + $0x28] sm:$0xff] %v267
                  %v269 = vld [vmem:[%s255 + $0x60] sm:$0xff]
                  %270 = vst [vmem:[%s256 + $0x30] sm:$0xff] %v269
                  %v271 = vld [vmem:[%s255 + $0x70] sm:$0xff]
                  %272 = vst [vmem:[%s256 + $0x38] sm:$0xff] %v271
                $region56: #{position_wise_ffn.1} parent=50 // loop_footer
                  %s254 = sadd.s32 1, %s250
                $region57: #{position_wise_ffn.1} parent=50 // loop_footer_branch
                  %249 = sbr.rel target = $region53
                $region58: #{position_wise_ffn.1} parent=50 // loop_exit
                  _
              $region51: #{position_wise_ffn.1} parent=35 // pred_fallthru
                _
              // Predicated region
              $region59: #{position_wise_ffn.1} parent=35 // pred_check
                _
              $region60: #{position_wise_ffn.1} parent=35 // pred_check_branch
                %274 = sbr.rel target = $region62
              $region61: #{position_wise_ffn.1} parent=35 // pred_region
                _
              $region62: #{position_wise_ffn.1} parent=35 // pred_fallthru
                _
            $region36: #{position_wise_ffn.1} parent=31 // pred_fallthru
              _
            // Predicated region
            $region37: #{position_wise_ffn.1} parent=31 // pred_check
              _
            $region38: #{position_wise_ffn.1} parent=31 // pred_check_branch
              %220 = sbr.rel target = $region40
            $region39: #{position_wise_ffn.1} parent=31 // pred_region
              %s222 = ssub.s32 256, 1
              loop: start=0, step=1, limit=1
              $region41: #{position_wise_ffn.1} parent=39 // loop_pre_header
                _
              $region42: #{position_wise_ffn.1} parent=39 // loop_header
                %s224 = sphi 0, %s228
                %p225 = scmp.ge.s32.totalorder %s224, 1
                %s229 = sphi %s214, %s214
                %s230 = sphi %s212, %s212
              $region43: #{position_wise_ffn.1} parent=39 // loop_header_branch
                %227 = sbr.rel (%p225) target = $region47
              $region44: #{position_wise_ffn.1} parent=39 // loop_body
                %v231 = vld [vmem:[%s229] sm:%s222]
                %232 = vst [vmem:[%s230] sm:%s222] %v231
                %v233 = vld [vmem:[%s229 + $0x10] sm:%s222]
                %234 = vst [vmem:[%s230 + $0x8] sm:%s222] %v233
                %v235 = vld [vmem:[%s229 + $0x20] sm:%s222]
                %236 = vst [vmem:[%s230 + $0x10] sm:%s222] %v235
                %v237 = vld [vmem:[%s229 + $0x30] sm:%s222]
                %238 = vst [vmem:[%s230 + $0x18] sm:%s222] %v237
                %v239 = vld [vmem:[%s229 + $0x40] sm:%s222]
                %240 = vst [vmem:[%s230 + $0x20] sm:%s222] %v239
                %v241 = vld [vmem:[%s229 + $0x50] sm:%s222]
                %242 = vst [vmem:[%s230 + $0x28] sm:%s222] %v241
                %v243 = vld [vmem:[%s229 + $0x60] sm:%s222]
                %244 = vst [vmem:[%s230 + $0x30] sm:%s222] %v243
                %v245 = vld [vmem:[%s229 + $0x70] sm:%s222]
                %246 = vst [vmem:[%s230 + $0x38] sm:%s222] %v245
              $region45: #{position_wise_ffn.1} parent=39 // loop_footer
                %s228 = sadd.s32 1, %s224
              $region46: #{position_wise_ffn.1} parent=39 // loop_footer_branch
                %223 = sbr.rel target = $region42
              $region47: #{position_wise_ffn.1} parent=39 // loop_exit
                _
            $region40: #{position_wise_ffn.1} parent=31 // pred_fallthru
              _
          $region32: #{position_wise_ffn.1} parent=27 // pred_fallthru
            _
          %275 = vnop
        $region28: #{position_wise_ffn.1} parent=23 // pred_fallthru
          _
        // Predicated region
        $region63: #{position_wise_ffn.1} parent=23 // pred_check
          %p276 = pneg %p96
        $region64: #{position_wise_ffn.1} parent=23 // pred_check_branch
          %278 = sbr.rel (%p276) target = $region66
        $region65: #{position_wise_ffn.1} parent=23 // pred_region
          %p279 = scmp.lt.s32.totalorder %s20, 1
          %s280 = scalar_select %p279, %s20, 1
          %s281 = scalar_lea.vmem %s2, %s280
        $region66: #{position_wise_ffn.1} parent=23 // pred_fallthru
          _
        // Predicated region
        $region67: #{position_wise_ffn.1} parent=23 // pred_check
          %p282 = pneg %p122
        $region68: #{position_wise_ffn.1} parent=23 // pred_check_branch
          %284 = sbr.rel (%p282) target = $region70
        $region69: #{position_wise_ffn.1} parent=23 // pred_region
          %s285 = smul.u32 16, %s20
          %p286 = scmp.lt.s32.totalorder %s285, 31
          %s287 = scalar_select %p286, %s285, 31
          %s288 = smul.addr %s287, 8
          %s289 = scalar_lea.vmem %s3, %s288
          %s290 = smul.u32 16, %s20
        $region70: #{position_wise_ffn.1} parent=23 // pred_fallthru
          _
      $region24: #{position_wise_ffn.1} parent=5 // pred_fallthru
        _
      %p291 = scmp.le.s32.totalorder 1, %s12
      %p292 = scmp.lt.s32.totalorder %s12, 3
      %p293 = pnand %p291, %p292
      %p294 = pneg %p293
      // Predicated region
      $region71: #{position_wise_ffn.1} parent=5 // pred_check
        _
      $region72: #{position_wise_ffn.1} parent=5 // pred_check_branch
        %296 = sbr.rel (%p293) target = $region74
      $region73: #{position_wise_ffn.1} parent=5 // pred_region
        %s297 = ssub.s32 %s12, 1
        %s298 = sand.u32 %s63, 1
        %s299 = sand.u32 %s63, 1
        %s300 = smul.addr %s299, 64
        %s301 = scalar_lea.vmem [#allocation3], %s300
        // Predicated region
        $region75: #{position_wise_ffn.1} parent=73 // pred_check
          %p302 = pneg %p76
        $region76: #{position_wise_ffn.1} parent=73 // pred_check_branch
          %304 = sbr.rel (%p302) target = $region78
        $region77: #{position_wise_ffn.1} parent=73 // pred_region
          _
        $region78: #{position_wise_ffn.1} parent=73 // pred_fallthru
          _
        %s305 = smul.u32 2, %s21
        %p306 = scmp.lt.s32.totalorder %s305, 1
        %s307 = scalar_select %p306, %s305, 1
        %s308 = smul.addr %s307, 8
        %s309 = scalar_lea.vmem %s0, %s308
        %p310 = pneg %p50
        %p311 = pneg %p47
        %s312 = sand.u32 %s63, 1
        %s313 = sand.u32 %s63, 1
        %s314 = smul.addr %s313, 64
        %s315 = scalar_lea.vmem [#allocation3], %s314
        %p316 = pneg %p76
        %p317 = pneg %p73
        %p318 = scmp.lt.s32.totalorder %s22, 1
        %s319 = scalar_select %p318, %s22, 1
        %s320 = scalar_lea.vmem %s2, %s319
        %p321 = pneg %p102
        %p322 = pneg %p99
        %s323 = smul.u32 16, %s22
        %p324 = scmp.lt.s32.totalorder %s323, 31
        %s325 = scalar_select %p324, %s323, 31
        %s326 = smul.addr %s325, 8
        %s327 = scalar_lea.vmem %s3, %s326
        %p328 = pneg %p128
        %p329 = pneg %p125
        %p330 = pneg %p149
        %p331 = pneg %p146
        %p332 = pneg %p175
        %p333 = pneg %p172
        %s334 = smul.u32 2, %s21
        %p335 = scmp.lt.s32.totalorder %s334, 1
        %s336 = scalar_select %p335, %s334, 1
        %s337 = smul.addr %s336, 8
        %s338 = scalar_lea.vmem %s0, %s337
        %s339 = smul.u32 2, %s21
        %p340 = scmp.lt.s32.totalorder %s22, 1
        %s341 = scalar_select %p340, %s22, 1
        %s342 = scalar_lea.vmem %s2, %s341
        %s343 = smul.u32 16, %s22
        %p344 = scmp.lt.s32.totalorder %s343, 31
        %s345 = scalar_select %p344, %s343, 31
        %s346 = smul.addr %s345, 8
        %s347 = scalar_lea.vmem %s3, %s346
        %s348 = smul.u32 16, %s22
        %s349 = smul.u32 2, %s21
        %p350 = scmp.eq.s32.totalorder %s22, 0
        // Predicated region
        $region79: #{position_wise_ffn.1} parent=73 // pred_check
          %p351 = pneg %p350
        $region80: #{position_wise_ffn.1} parent=73 // pred_check_branch
          %353 = sbr.rel (%p351) target = $region82
        $region81: #{position_wise_ffn.1} parent=73 // pred_region
          %vm354 = vcmask 523264
          %355 = vst.msk [vmem:[#allocation2] sm:$0xff] %vm354, 0.0
          %356 = vst.msk [vmem:[#allocation2 + $0x8] sm:$0xff] %vm354, 0.0
        $region82: #{position_wise_ffn.1} parent=73 // pred_fallthru
          _
        %v357 = vld [vmem:[%s338] sm:$0xff]
        %v358 = vld [vmem:[%s338 + $0x8] sm:$0xff]
        %v359 = vld [vmem:[%s301] sm:$0xff]
        %v360 = vld [vmem:[%s301 + $0x8] sm:$0xff]
        %v361 = vld [vmem:[%s301 + $0x10] sm:$0xff]
        %v362 = vld [vmem:[%s301 + $0x18] sm:$0xff]
        %v363 = vld [vmem:[%s301 + $0x20] sm:$0xff]
        %v364 = vld [vmem:[%s301 + $0x28] sm:$0xff]
        %v365 = vld [vmem:[%s301 + $0x30] sm:$0xff]
        %v366 = vld [vmem:[%s301 + $0x38] sm:$0xff]
        %v367 = vld [vmem:[%s342] sm:$0x1]
        %v369 = vlaneseq
        %v370 = vshrl.u32 %v369, 7
        %v371 = vsub.s32 0, %v370
        %v372 = vrot.slane %v367, %v371
        %vm374 = vcmask 523264
        %v376 = vsel %vm374, %v357, 0
        %v379 = vsel %vm374, %v358, 0
        %381 = vmatprep.subr.mxu0 0.0
        %382 = vmatpush1.msra.mxu0 0.0
        %383 = vmatprep.subr.mxu0 0.0
        %384 = vmatpush1.msra.mxu0 0.0
        %385 = vmatprep.subr.mxu0 0.0
        %386 = vmatpush1.msra.mxu0 0.0
        %387 = vmatprep.subr.mxu0 0.0
        %388 = vmatpush1.msra.mxu0 0.0
        %389 = vmatprep.subr.mxu0 0.0
        %390 = vmatpush1.msra.mxu0 0.0
        %391 = vmatprep.subr.mxu0 0.0
        %392 = vmatpush1.msra.mxu0 0.0
        %393 = vmatprep.subr.mxu0 0.0
        %394 = vmatpush1.msra.mxu0 0.0
        %395 = vmatprep.subr.mxu0 0.0
        %396 = vmatpush1.msra.mxu0 0.0
        %397 = vmatprep.subr.mxu0 0.0
        %398 = vmatpush1.msra.mxu0 %v366
        %399 = vmatprep.subr.mxu0 0.0
        %400 = vmatpush1.msra.mxu0 %v365
        %401 = vmatprep.subr.mxu0 0.0
        %402 = vmatpush1.msra.mxu0 %v364
        %403 = vmatprep.subr.mxu0 0.0
        %404 = vmatpush1.msra.mxu0 %v363
        %405 = vmatprep.subr.mxu0 0.0
        %406 = vmatpush1.msra.mxu0 %v362
        %407 = vmatprep.subr.mxu0 0.0
        %408 = vmatpush1.msra.mxu0 %v361
        %409 = vmatprep.subr.mxu0 0.0
        %410 = vmatpush1.msra.mxu0 %v360
        %411 = vmatprep.subr.mxu0 0.0
        %412 = vmatpush1.msra.mxu0 %v359
        %413 = vmatprep.subr.mxu0 0.0
        %414 = vmatpush2.msra.mxu0 0.0
        %415 = vmatprep.subr.mxu0 0.0
        %416 = vmatpush2.msra.mxu0 0.0
        %417 = vmatprep.subr.mxu0 0.0
        %418 = vmatpush2.msra.mxu0 0.0
        %419 = vmatprep.subr.mxu0 0.0
        %420 = vmatpush2.msra.mxu0 0.0
        %421 = vmatprep.subr.mxu0 0.0
        %422 = vmatpush2.msra.mxu0 0.0
        %423 = vmatprep.subr.mxu0 0.0
        %424 = vmatpush2.msra.mxu0 0.0
        %425 = vmatprep.subr.mxu0 0.0
        %426 = vmatpush2.msra.mxu0 0.0
        %427 = vmatprep.subr.mxu0 0.0
        %428 = vmatpush2.msra.mxu0 0.0
        %429 = vmatprep.subr.mxu0 0.0
        %430 = vmatpush2.msra.mxu0 0.0
        %431 = vmatprep.subr.mxu0 0.0
        %432 = vmatpush2.msra.mxu0 0.0
        %433 = vmatprep.subr.mxu0 0.0
        %434 = vmatpush2.msra.mxu0 0.0
        %435 = vmatprep.subr.mxu0 0.0
        %436 = vmatpush2.msra.mxu0 0.0
        %437 = vmatprep.subr.mxu0 0.0
        %438 = vmatpush2.msra.mxu0 0.0
        %439 = vmatprep.subr.mxu0 0.0
        %440 = vmatpush2.msra.mxu0 0.0
        %441 = vmatprep.subr.mxu0 0.0
        %442 = vmatpush2.msra.mxu0 0.0
        %443 = vmatprep.subr.mxu0 0.0
        %444 = vmatpush2.msra.mxu0 0.0
        %445 = vmatprep.mubr.f32.mxu0 0.0
        %446 = vmatmul.mubr.f32.gmra.mxu0 %v376
        %v447 = vpop.f32.mrf.mxu0
        %v448 = vadd.f32 %v372, %v447
        %v449 = vpop.f32.mrf.mxu0
        %450 = vmatprep.mubr.f32.mxu0 0.0
        %451 = vmatmul.mubr.f32.gmra.mxu0 %v379
        %v452 = vpop.f32.mrf.mxu0
        %v453 = vadd.f32 %v372, %v452
        %v454 = vpop.f32.mrf.mxu0
        %455 = vdwg.mxu0
        %v456 = vmax.f32 %v448, 0.0
        %v457 = vmax.f32 %v453, 0.0
        %v458 = vld [vmem:[#allocation2] sm:$0xff]
        %v459 = vld [vmem:[#allocation2 + $0x8] sm:$0xff]
        %v460 = vld [vmem:[%s347] sm:$0xff]
        %v461 = vld [vmem:[%s347 + $0x8] sm:$0xff]
        %v462 = vld [vmem:[%s347 + $0x10] sm:$0xff]
        %v463 = vld [vmem:[%s347 + $0x18] sm:$0xff]
        %v464 = vld [vmem:[%s347 + $0x20] sm:$0xff]
        %v465 = vld [vmem:[%s347 + $0x28] sm:$0xff]
        %v466 = vld [vmem:[%s347 + $0x30] sm:$0xff]
        %v467 = vld [vmem:[%s347 + $0x38] sm:$0xff]
        %v468 = vld [vmem:[%s347 + $0x40] sm:$0xff]
        %v469 = vld [vmem:[%s347 + $0x48] sm:$0xff]
        %v470 = vld [vmem:[%s347 + $0x50] sm:$0xff]
        %v471 = vld [vmem:[%s347 + $0x58] sm:$0xff]
        %v472 = vld [vmem:[%s347 + $0x60] sm:$0xff]
        %v473 = vld [vmem:[%s347 + $0x68] sm:$0xff]
        %v474 = vld [vmem:[%s347 + $0x70] sm:$0xff]
        %v475 = vld [vmem:[%s347 + $0x78] sm:$0xff]
        %476 = vmatprep.subr.mxu0 0.0
        %477 = vmatpush1.msra.mxu0 %v475
        %478 = vmatprep.subr.mxu0 0.0
        %479 = vmatpush1.msra.mxu0 %v474
        %480 = vmatprep.subr.mxu0 0.0
        %481 = vmatpush1.msra.mxu0 %v473
        %482 = vmatprep.subr.mxu0 0.0
        %483 = vmatpush1.msra.mxu0 %v472
        %484 = vmatprep.subr.mxu0 0.0
        %485 = vmatpush1.msra.mxu0 %v471
        %486 = vmatprep.subr.mxu0 0.0
        %487 = vmatpush1.msra.mxu0 %v470
        %488 = vmatprep.subr.mxu0 0.0
        %489 = vmatpush1.msra.mxu0 %v469
        %490 = vmatprep.subr.mxu0 0.0
        %491 = vmatpush1.msra.mxu0 %v468
        %492 = vmatprep.subr.mxu0 0.0
        %493 = vmatpush1.msra.mxu0 %v467
        %494 = vmatprep.subr.mxu0 0.0
        %495 = vmatpush1.msra.mxu0 %v466
        %496 = vmatprep.subr.mxu0 0.0
        %497 = vmatpush1.msra.mxu0 %v465
        %498 = vmatprep.subr.mxu0 0.0
        %499 = vmatpush1.msra.mxu0 %v464
        %500 = vmatprep.subr.mxu0 0.0
        %501 = vmatpush1.msra.mxu0 %v463
        %502 = vmatprep.subr.mxu0 0.0
        %503 = vmatpush1.msra.mxu0 %v462
        %504 = vmatprep.subr.mxu0 0.0
        %505 = vmatpush1.msra.mxu0 %v461
        %506 = vmatprep.subr.mxu0 0.0
        %507 = vmatpush1.msra.mxu0 %v460
        %508 = vmatprep.subr.mxu0 0.0
        %509 = vmatpush2.msra.mxu0 0.0
        %510 = vmatprep.subr.mxu0 0.0
        %511 = vmatpush2.msra.mxu0 0.0
        %512 = vmatprep.subr.mxu0 0.0
        %513 = vmatpush2.msra.mxu0 0.0
        %514 = vmatprep.subr.mxu0 0.0
        %515 = vmatpush2.msra.mxu0 0.0
        %516 = vmatprep.subr.mxu0 0.0
        %517 = vmatpush2.msra.mxu0 0.0
        %518 = vmatprep.subr.mxu0 0.0
        %519 = vmatpush2.msra.mxu0 0.0
        %520 = vmatprep.subr.mxu0 0.0
        %521 = vmatpush2.msra.mxu0 0.0
        %522 = vmatprep.subr.mxu0 0.0
        %523 = vmatpush2.msra.mxu0 0.0
        %524 = vmatprep.subr.mxu0 0.0
        %525 = vmatpush2.msra.mxu0 0.0
        %526 = vmatprep.subr.mxu0 0.0
        %527 = vmatpush2.msra.mxu0 0.0
        %528 = vmatprep.subr.mxu0 0.0
        %529 = vmatpush2.msra.mxu0 0.0
        %530 = vmatprep.subr.mxu0 0.0
        %531 = vmatpush2.msra.mxu0 0.0
        %532 = vmatprep.subr.mxu0 0.0
        %533 = vmatpush2.msra.mxu0 0.0
        %534 = vmatprep.subr.mxu0 0.0
        %535 = vmatpush2.msra.mxu0 0.0
        %536 = vmatprep.subr.mxu0 0.0
        %537 = vmatpush2.msra.mxu0 0.0
        %538 = vmatprep.subr.mxu0 0.0
        %539 = vmatpush2.msra.mxu0 0.0
        %540 = vmatprep.mubr.f32.mxu0 0.0
        %541 = vmatmul.mubr.f32.gmra.mxu0 %v456
        %v542 = vpop.f32.mrf.mxu0
        %v543 = vadd.f32 0.0, %v542
        %v544 = vpop.f32.mrf.mxu0
        %545 = vmatprep.mubr.f32.mxu0 0.0
        %546 = vmatmul.mubr.f32.gmra.mxu0 %v457
        %v547 = vpop.f32.mrf.mxu0
        %v548 = vadd.f32 0.0, %v547
        %v549 = vpop.f32.mrf.mxu0
        %550 = vdwg.mxu0
        %v551 = vadd.f32 %v458, %v543
        %v552 = vadd.f32 %v459, %v548
        %553 = vst.msk [vmem:[#allocation2] sm:$0xff] %vm374, %v551
        %554 = vst.msk [vmem:[#allocation2 + $0x8] sm:$0xff] %vm374, %v552
        %p555 = scmp.eq.s32.totalorder %s22, 1
        // Predicated region
        $region83: #{position_wise_ffn.1} parent=73 // pred_check
          %p556 = pneg %p555
        $region84: #{position_wise_ffn.1} parent=73 // pred_check_branch
          %558 = sbr.rel (%p556) target = $region86
        $region85: #{position_wise_ffn.1} parent=73 // pred_region
          %v559 = vld [vmem:[#allocation2] sm:$0xff]
          %v560 = vld [vmem:[#allocation2 + $0x8] sm:$0xff]
          %v561 = vld [vmem:[%s4] sm:$0x1]
          %v563 = vlaneseq
          %v564 = vshrl.u32 %v563, 7
          %v565 = vsub.s32 0, %v564
          %v566 = vrot.slane %v561, %v565
          %v568 = vadd.f32 %v559, %v566
          %v569 = vadd.f32 %v560, %v566
          %570 = vst.msk [vmem:[#allocation4] sm:$0xff] %vm374, %v568
          %571 = vst.msk [vmem:[#allocation4 + $0x8] sm:$0xff] %vm374, %v569
        $region86: #{position_wise_ffn.1} parent=73 // pred_fallthru
          _
        // Predicated region
        $region87: #{position_wise_ffn.1} parent=73 // pred_check
          %p572 = pneg %p172
        $region88: #{position_wise_ffn.1} parent=73 // pred_check_branch
          %574 = sbr.rel (%p572) target = $region90
        $region89: #{position_wise_ffn.1} parent=73 // pred_region
          %s575 = smul.u32 2, %s21
          %s577 = ssub.s32 256, 256
          %578 = vsyncadd [#allocation5], %s577
          %s579 = smul.addr %s575, 128
          %s580 = scalar_lea.hbm %s5, %s579
          %s581 = sshll.u32 [#allocation4], 4
          %s582 = int_to_ptr.vmem [resolvable:$true] %s581
          %587 = dma.vmem_to_hbm [thread:$0]  %s582, 256, %s580, [#allocation5], 128, 128, 8
        $region90: #{position_wise_ffn.1} parent=73 // pred_fallthru
          _
        // Predicated region
        $region91: #{position_wise_ffn.1} parent=73 // pred_check
          %p588 = pneg %p172
        $region92: #{position_wise_ffn.1} parent=73 // pred_check_branch
          %590 = sbr.rel (%p588) target = $region94
        $region93: #{position_wise_ffn.1} parent=73 // pred_region
          %591 = dma.done [#allocation5], 256
        $region94: #{position_wise_ffn.1} parent=73 // pred_fallthru
          _
      $region74: #{position_wise_ffn.1} parent=5 // pred_fallthru
        _
      %p592 = scmp.le.s32.totalorder 2, %s12
      // Predicated region
      $region95: #{position_wise_ffn.1} parent=5 // pred_check
        %p593 = pneg %p592
      $region96: #{position_wise_ffn.1} parent=5 // pred_check_branch
        %595 = sbr.rel (%p593) target = $region98
      $region97: #{position_wise_ffn.1} parent=5 // pred_region
        %s596 = ssub.s32 %s12, 2
      $region98: #{position_wise_ffn.1} parent=5 // pred_fallthru
        _
    $region6: #{position_wise_ffn.1} parent=1 // loop_footer
      %s16 = sadd.s32 1, %s12
    $region7: #{position_wise_ffn.1} parent=1 // loop_footer_branch
      %11 = sbr.rel target = $region3
    $region8: #{position_wise_ffn.1} parent=1 // loop_exit
      _
    %597 = vsyncpa [#allocation5], 1
    %s598 = scalar_lea.sflag [#allocation5], 1
    %599 = vsyncpa %s598, 1

</llo_original>
